<compile_context>
chip_gen: v5e
topology: v5e:2x2
jax: 0.10.0
libtpu: 0.0.40
codegen_flags: <defaults>
</compile_context>

<pallas_src>
import jax
import jax.numpy as jnp
from jax.experimental import pallas as pl
from jax.experimental.pallas import tpu as pltpu


def _round_up(v, m):
    return ((v + m - 1) // m) * m


def _embedding_kernel(x_ref, w_ref, b_ref, o_ref):
    # ReLU in f32 (exact) -> bf16 cast -> MXU matmul with f32 accumulation
    # -> f32 bias add -> store in output dtype.
    x = jnp.maximum(x_ref[...], 0.0).astype(w_ref.dtype)
    acc = jnp.dot(x, w_ref[...], preferred_element_type=jnp.float32)
    o_ref[...] = (acc + b_ref[...]).astype(o_ref.dtype)


def init_embedding_params(weight_t, bias):
    """One-time (init-time) weight prep.

    Casts the Linear weight (stored as W^T: (512, E)) to bf16 and pads E up to
    a lane multiple (128). Doing this per call would roughly double the
    dominant weight HBM traffic, so it is hoisted here.
    """
    K, E = weight_t.shape
    Ep = _round_up(E, 128)
    w_bf = weight_t.astype(jnp.bfloat16)
    b2d = bias.astype(jnp.float32).reshape(1, E)
    if Ep != E:
        w_bf = jnp.pad(w_bf, ((0, 0), (0, Ep - E)))
        b2d = jnp.pad(b2d, ((0, 0), (0, Ep - E)))
    return w_bf, b2d, E


def embedding_layer(x, w_bf, b2d, E, *, tb=256, out_dtype=jnp.float32):
    """Forward pass of EmbeddingLayer: squeeze -> ReLU -> Linear.

    x:    (B, 512, 1, 1) or (B, 512) activations (f32 or bf16)
    w_bf: (512, Ep) bf16, pre-cast / pre-padded by init_embedding_params
    b2d:  (1, Ep) f32
    E:    true (unpadded) embed size
    Returns (B, E) in `out_dtype` (f32 by default for module parity).
    """
    B = x.shape[0]
    K = w_bf.shape[0]
    Ep = w_bf.shape[1]
    x2d = x.reshape(B, K)  # torch: x.squeeze(-1).squeeze(-1)
    x_bytes = x2d.dtype.itemsize
    o_bytes = jnp.dtype(out_dtype).itemsize

    cost = pl.CostEstimate(
        flops=2 * B * K * Ep,
        transcendentals=0,
        bytes_accessed=B * K * x_bytes + K * Ep * 2 + Ep * 4 + B * Ep * o_bytes,
    )

    Bp8 = _round_up(B, 8)
    if Bp8 < 16:
        # Tiny batch: one whole-array block. No per-call pad of x and no output
        # row slice -- a masked sublane store on a tiny output is cheaper.
        out = pl.pallas_call(
            _embedding_kernel,
            out_shape=jax.ShapeDtypeStruct((B, Ep), out_dtype),
            cost_estimate=cost,
        )(x2d, w_bf, b2d)
        return out if Ep == E else out[:, :E]

    # Tiled path: guarantee >= 2 grid steps along B (uses both v7x TensorCores;
    # harmless on single-TC v5e/v6e).
    tb_ = min(tb, _round_up(pl.cdiv(Bp8, 2), 8))
    Bp = _round_up(B, tb_)
    grid_b = Bp // tb_
    if Bp != B:
        x2d = jnp.pad(x2d, ((0, Bp - B), (0, 0)))

    # VMEM budgeting (v7x: 64 MiB physical, 32 MiB scoped default).
    w_bytes = K * Ep * 2
    single_buffer_w = w_bytes > (8 * 2 ** 20) and hasattr(pl, "Buffered")
    w_vmem = w_bytes if single_buffer_w else 2 * w_bytes
    resident_vmem = (w_vmem + 2 * Ep * 4
                     + 2 * tb_ * K * x_bytes
                     + 2 * tb_ * Ep * o_bytes)
    RESIDENT_BUDGET = 40 * 2 ** 20  # v7x-safe resident-weight budget

    if resident_vmem <= RESIDENT_BUDGET:
        # Weight (and bias) resident in VMEM: constant index_map => the weight
        # is DMA'd exactly once per launch; only the B axis is tiled.
        vmem_limit = int(min(max(resident_vmem * 5 // 4, 24 * 2 ** 20),
                             56 * 2 ** 20))
        w_kwargs = {}
        if single_buffer_w:
            # Don't double-buffer a block that never changes (halves the
            # resident weight's VMEM footprint; matters under v7x's 64 MiB).
            w_kwargs = dict(pipeline_mode=pl.Buffered(1))
        out = pl.pallas_call(
            _embedding_kernel,
            out_shape=jax.ShapeDtypeStruct((Bp, Ep), out_dtype),
            grid=(grid_b,),
            in_specs=[
                pl.BlockSpec((tb_, K), lambda i: (i, 0)),
                pl.BlockSpec((K, Ep), lambda i: (0, 0), **w_kwargs),
                pl.BlockSpec((1, Ep), lambda i: (0, 0), **w_kwargs),
            ],
            out_specs=pl.BlockSpec((tb_, Ep), lambda i: (i, 0)),
            compiler_params=pltpu.CompilerParams(
                dimension_semantics=("parallel",),
                vmem_limit_bytes=vmem_limit),
            cost_estimate=cost,
        )(x2d, w_bf, b2d)
    else:
        # Very large E: weight cannot stay resident. Tile E as the OUTER grid
        # axis so the weight block is constant along the inner (B) axis and
        # only the small x tile is re-streamed from HBM.
        units = Ep // 128
        te_units = 1
        for d in range(min(units, 16), 0, -1):  # te_ <= 2048 and divides Ep
            if units % d == 0:
                te_units = d
                break
        te_ = te_units * 128
        grid_e = Ep // te_
        tiled_vmem = (2 * K * te_ * 2 + 2 * te_ * 4
                      + 2 * tb_ * K * x_bytes + 2 * tb_ * te_ * o_bytes)
        vmem_limit = int(min(max(tiled_vmem * 5 // 4, 24 * 2 ** 20),
                             56 * 2 ** 20))
        out = pl.pallas_call(
            _embedding_kernel,
            out_shape=jax.ShapeDtypeStruct((Bp, Ep), out_dtype),
            grid=(grid_e, grid_b),
            in_specs=[
                pl.BlockSpec((tb_, K), lambda e, b: (b, 0)),
                pl.BlockSpec((K, te_), lambda e, b: (0, e)),
                pl.BlockSpec((1, te_), lambda e, b: (0, e)),
            ],
            out_specs=pl.BlockSpec((tb_, te_), lambda e, b: (b, e)),
            compiler_params=pltpu.CompilerParams(
                dimension_semantics=("parallel", "parallel"),
                vmem_limit_bytes=vmem_limit),
            cost_estimate=cost,
        )(x2d, w_bf, b2d)

    if Bp != B or Ep != E:
        out = out[:B, :E]
    return out


if __name__ == "__main__":
    key = jax.random.PRNGKey(0)
    k_x, k_w, k_b, k_x2 = jax.random.split(key, 4)

    in_features = 512
    embed_size = 128

    # Parameters mimicking torch.nn.Linear(512, embed_size) init:
    # U(-1/sqrt(fan_in), 1/sqrt(fan_in)); stored as W^T: (512, E).
    bound = 1.0 / (in_features ** 0.5)
    weight_t = jax.random.uniform(k_w, (in_features, embed_size),
                                  dtype=jnp.float32, minval=-bound, maxval=bound)
    bias = jax.random.uniform(k_b, (embed_size,), dtype=jnp.float32,
                              minval=-bound, maxval=bound)

    # Hoisted, once-per-model weight prep (bf16 cast + lane pad).
    w_bf, b2d, E = init_embedding_params(weight_t, bias)
    jax.block_until_ready((w_bf, b2d))

    fwd = jax.jit(embedding_layer, static_argnums=(3,))

    def ref_f32(xx):
        x2 = xx.reshape(xx.shape[0], -1)
        return jnp.maximum(x2, 0.0) @ weight_t + bias

    def ref_bf16(xx):
        x2 = jnp.maximum(xx.reshape(xx.shape[0], -1), 0.0).astype(jnp.bfloat16)
        return jnp.dot(x2, weight_t.astype(jnp.bfloat16),
                       preferred_element_type=jnp.float32) + bias

    # --- tiny-batch path (single whole-array block) ---
    B = 4
    x = jax.random.normal(k_x, (B, in_features, 1, 1), dtype=jnp.float32)
    out = jax.block_until_ready(fwd(x, w_bf, b2d, E))
    assert out.shape == (B, embed_size)
    assert out.dtype == jnp.float32
    assert jnp.allclose(out, ref_bf16(x), atol=1e-4, rtol=1e-4)
    assert jnp.allclose(out, ref_f32(x), atol=3e-2, rtol=3e-2)

    # --- tiled resident-weight path (deployment batch, >=2 B tiles) ---
    B2 = 512
    x2 = jax.random.normal(k_x2, (B2, in_features, 1, 1), dtype=jnp.float32)
    out2 = jax.block_until_ready(fwd(x2, w_bf, b2d, E))
    assert out2.shape == (B2, embed_size)
    assert out2.dtype == jnp.float32
    assert jnp.allclose(out2, ref_bf16(x2), atol=1e-4, rtol=1e-4)
    assert jnp.allclose(out2, ref_f32(x2), atol=3e-2, rtol=3e-2)

    print("KERNEL_OK")
</pallas_src>

<mosaic_0001>
module attributes {stable_mosaic.version = 11 : i64} {
  func.func @_embedding_kernel(%arg0: memref<4x512xf32, #tpu.memory_space<vmem>>, %arg1: memref<512x128xbf16, #tpu.memory_space<vmem>>, %arg2: memref<1x128xf32, #tpu.memory_space<vmem>>, %arg3: memref<4x128xf32, #tpu.memory_space<vmem>>) attributes {dimension_semantics = [], scalar_prefetch = 0 : i64, scratch_operands = 0 : i64, tpu.core_type = #tpu.core_type<tc>} {
    %c0 = arith.constant 0 : index
    %c0_0 = arith.constant 0 : index
    %0 = vector.load %arg0[%c0, %c0_0] : memref<4x512xf32, #tpu.memory_space<vmem>>, vector<4x512xf32>
    %cst = arith.constant 0.000000e+00 : f32
    %1 = vector.broadcast %cst : f32 to vector<4x512xf32>
    %2 = arith.maximumf %0, %1 : vector<4x512xf32>
    %3 = arith.truncf %2 : vector<4x512xf32> to vector<4x512xbf16>
    %c0_1 = arith.constant 0 : index
    %c0_2 = arith.constant 0 : index
    %4 = vector.load %arg1[%c0_1, %c0_2] : memref<512x128xbf16, #tpu.memory_space<vmem>>, vector<512x128xbf16>
    %cst_3 = arith.constant dense<0.000000e+00> : vector<4x128xf32>
    %5 = tpu.matmul %3, %4, %cst_3 {dimension_numbers = #tpu.dot_dimension_numbers<[1], [0], [0], [1], [0, 0, 1, 1], [], []>} : vector<4x512xbf16>, vector<512x128xbf16>, vector<4x128xf32> -> vector<4x128xf32>
    %c0_4 = arith.constant 0 : index
    %c0_5 = arith.constant 0 : index
    %6 = vector.load %arg2[%c0_4, %c0_5] : memref<1x128xf32, #tpu.memory_space<vmem>>, vector<1x128xf32>
    %7 = vector.broadcast %6 : vector<1x128xf32> to vector<4x128xf32>
    %8 = arith.addf %5, %7 : vector<4x128xf32>
    %c0_6 = arith.constant 0 : index
    %c0_7 = arith.constant 0 : index
    %9 = vector.load %arg3[%c0_6, %c0_7] : memref<4x128xf32, #tpu.memory_space<vmem>>, vector<4x128xf32>
    tpu.vector_store %arg3[%c0_6, %c0_7], %8 {strides = array<i32>} : memref<4x128xf32, #tpu.memory_space<vmem>>, vector<4x128xf32>,
    return
  }
}

</mosaic_0001>

<llo_original>
// kernel: embedding_layer.1
$region0: #{embedding_layer.1}
  #allocation0 [shape = 'u32[]', space=smem, size = 0x4, offset = 0x4, fixed_abs, tag = 'smem constant byte address 0x4 - core index']
  #allocation1 [shape = 'u32[72,128]{1,0:T(1,128)}', space=vmem, size = 0x9000, scoped, tag = 'internal scratch']
  %s0 = inlined_call_operand.vmem [shape: f32[4,512], index: 0, kind: input, shape index: {}]
  %s1 = inlined_call_operand.hbm [shape: bf16[512,128], index: 1, kind: input, shape index: {}]
  %s2 = inlined_call_operand.vmem [shape: f32[1,128], index: 2, kind: input, shape index: {}]
  %s3 = inlined_call_operand.hbm [shape: f32[4,128], index: 3, kind: output, shape index: {}]
  %s4 = sld [smem:[#allocation0]]
  $region26: #{embedding_layer.1} parent=0
    _
  %s6 = ssub.s32 1, %s4
  %s7 = scalar_select 0, %s6, %s4
  $region1: #{embedding_layer.1} parent=0
    #allocation2 [shape = 'u8[131072]{0}', space=vmem, size = 0x20000, scoped, tag = 'input window, operand 1, single buffered']
    #allocation3 [shape = 's32[1]{0}', space=sflag, size = 0x4, scoped, tag = 'scoped memory for embedding_layer.1']
    #allocation4 [shape = 's32[1]{0}', space=sflag, size = 0x4, scoped, tag = 'scoped memory for embedding_layer.1']
    #allocation5 [shape = 'u8[2048]{0}', space=vmem, size = 0x800, scoped, tag = 'output window, operand 0, single buffered']
    %8 = vsyncpa [#allocation3], 0
    %9 = vsyncpa [#allocation4], 0
    // Predicated region
    $region2: #{embedding_layer.1} parent=1 // pred_check
      _
    $region3: #{embedding_layer.1} parent=1 // pred_check_branch
      %11 = sbr.rel (0) target = $region5
    $region4: #{embedding_layer.1} parent=1 // pred_region
      _
    $region5: #{embedding_layer.1} parent=1 // pred_fallthru
      _
    // Predicated region
    $region6: #{embedding_layer.1} parent=1 // pred_check
      _
    $region7: #{embedding_layer.1} parent=1 // pred_check_branch
      %13 = sbr.rel (0) target = $region9
    $region8: #{embedding_layer.1} parent=1 // pred_region
      %15 = vsyncadd [#allocation3], 0
      %s16 = sshll.u32 %s1, 4
      %s17 = int_to_ptr.hbm [resolvable:$true] %s16
      %s18 = sshll.u32 [#allocation2], 4
      %s19 = int_to_ptr.vmem [resolvable:$true] %s18
      %24 = dma.hbm_to_vmem [thread:$0]  %s17, 4096, %s19, [#allocation3], 64, 64, 4
    $region9: #{embedding_layer.1} parent=1 // pred_fallthru
      _
    // Predicated region
    $region10: #{embedding_layer.1} parent=1 // pred_check
      _
    $region11: #{embedding_layer.1} parent=1 // pred_check_branch
      %26 = sbr.rel (0) target = $region13
    $region12: #{embedding_layer.1} parent=1 // pred_region
      _
    $region13: #{embedding_layer.1} parent=1 // pred_fallthru
      _
    // Predicated region
    $region14: #{embedding_layer.1} parent=1 // pred_check
      _
    $region15: #{embedding_layer.1} parent=1 // pred_check_branch
      %28 = sbr.rel (0) target = $region17
    $region16: #{embedding_layer.1} parent=1 // pred_region
      %30 = dma.done [#allocation3], 4096
    $region17: #{embedding_layer.1} parent=1 // pred_fallthru
      _
    %v31 = vld [vmem:[%s0] sm:$0xff]
    %v32 = vld [vmem:[%s0 + $0x8] sm:$0xff]
    %v33 = vmax.f32 %v31, 0.0
    %v34 = vmax.f32 %v32, 0.0
    %37 = vst [vmem:[#allocation1] ss:$2 sm:$0xff] %v33
    %s38 = scalar_lea.vmem [#allocation1], 16
    %39 = vst [vmem:[%s38] ss:$2 sm:$0xff] %v34
    %v40 = vld.sshfl [vmem:[#allocation1] sm:$0xff pattern:$0x75316420]
    %v41 = vld.sshfl [vmem:[#allocation1 + $0x8] sm:$0xff pattern:$0x75316420]
    %v42 = vld.sshfl [vmem:[#allocation1 + $0x10] sm:$0xff pattern:$0x75316420]
    %v43 = vld.sshfl [vmem:[#allocation1 + $0x18] sm:$0xff pattern:$0x75316420]
    %v48 = vpack.c.bf16 %v40, %v40
    %v49 = vpack.c.bf16 %v41, %v41
    %v50 = vpack.c.bf16 %v42, %v42
    %v51 = vpack.c.bf16 %v43, %v43
    %v52 = vld [vmem:[#allocation2] sm:$0xf]
    %v53 = vld [vmem:[#allocation2 + $0x4] sm:$0xf]
    %v54 = vld [vmem:[#allocation2 + $0x8] sm:$0xf]
    %v55 = vld [vmem:[#allocation2 + $0xc] sm:$0xf]
    %v56 = vld [vmem:[#allocation2 + $0x10] sm:$0xf]
    %v57 = vld [vmem:[#allocation2 + $0x14] sm:$0xf]
    %v58 = vld [vmem:[#allocation2 + $0x18] sm:$0xf]
    %v59 = vld [vmem:[#allocation2 + $0x1c] sm:$0xf]
    %v60 = vld [vmem:[#allocation2 + $0x20] sm:$0xf]
    %v61 = vld [vmem:[#allocation2 + $0x24] sm:$0xf]
    %v62 = vld [vmem:[#allocation2 + $0x28] sm:$0xf]
    %v63 = vld [vmem:[#allocation2 + $0x2c] sm:$0xf]
    %v64 = vld [vmem:[#allocation2 + $0x30] sm:$0xf]
    %v65 = vld [vmem:[#allocation2 + $0x34] sm:$0xf]
    %v66 = vld [vmem:[#allocation2 + $0x38] sm:$0xf]
    %v67 = vld [vmem:[#allocation2 + $0x3c] sm:$0xf]
    %v68 = vld [vmem:[#allocation2 + $0x40] sm:$0xf]
    %v69 = vld [vmem:[#allocation2 + $0x44] sm:$0xf]
    %v70 = vld [vmem:[#allocation2 + $0x48] sm:$0xf]
    %v71 = vld [vmem:[#allocation2 + $0x4c] sm:$0xf]
    %v72 = vld [vmem:[#allocation2 + $0x50] sm:$0xf]
    %v73 = vld [vmem:[#allocation2 + $0x54] sm:$0xf]
    %v74 = vld [vmem:[#allocation2 + $0x58] sm:$0xf]
    %v75 = vld [vmem:[#allocation2 + $0x5c] sm:$0xf]
    %v76 = vld [vmem:[#allocation2 + $0x60] sm:$0xf]
    %v77 = vld [vmem:[#allocation2 + $0x64] sm:$0xf]
    %v78 = vld [vmem:[#allocation2 + $0x68] sm:$0xf]
    %v79 = vld [vmem:[#allocation2 + $0x6c] sm:$0xf]
    %v80 = vld [vmem:[#allocation2 + $0x70] sm:$0xf]
    %v81 = vld [vmem:[#allocation2 + $0x74] sm:$0xf]
    %v82 = vld [vmem:[#allocation2 + $0x78] sm:$0xf]
    %v83 = vld [vmem:[#allocation2 + $0x7c] sm:$0xf]
    %v84 = vld [vmem:[#allocation2 + $0x80] sm:$0xf]
    %v85 = vld [vmem:[#allocation2 + $0x84] sm:$0xf]
    %v86 = vld [vmem:[#allocation2 + $0x88] sm:$0xf]
    %v87 = vld [vmem:[#allocation2 + $0x8c] sm:$0xf]
    %v88 = vld [vmem:[#allocation2 + $0x90] sm:$0xf]
    %v89 = vld [vmem:[#allocation2 + $0x94] sm:$0xf]
    %v90 = vld [vmem:[#allocation2 + $0x98] sm:$0xf]
    %v91 = vld [vmem:[#allocation2 + $0x9c] sm:$0xf]
    %v92 = vld [vmem:[#allocation2 + $0xa0] sm:$0xf]
    %v93 = vld [vmem:[#allocation2 + $0xa4] sm:$0xf]
    %v94 = vld [vmem:[#allocation2 + $0xa8] sm:$0xf]
    %v95 = vld [vmem:[#allocation2 + $0xac] sm:$0xf]
    %v96 = vld [vmem:[#allocation2 + $0xb0] sm:$0xf]
    %v97 = vld [vmem:[#allocation2 + $0xb4] sm:$0xf]
    %v98 = vld [vmem:[#allocation2 + $0xb8] sm:$0xf]
    %v99 = vld [vmem:[#allocation2 + $0xbc] sm:$0xf]
    %v100 = vld [vmem:[#allocation2 + $0xc0] sm:$0xf]
    %v101 = vld [vmem:[#allocation2 + $0xc4] sm:$0xf]
    %v102 = vld [vmem:[#allocation2 + $0xc8] sm:$0xf]
    %v103 = vld [vmem:[#allocation2 + $0xcc] sm:$0xf]
    %v104 = vld [vmem:[#allocation2 + $0xd0] sm:$0xf]
    %v105 = vld [vmem:[#allocation2 + $0xd4] sm:$0xf]
    %v106 = vld [vmem:[#allocation2 + $0xd8] sm:$0xf]
    %v107 = vld [vmem:[#allocation2 + $0xdc] sm:$0xf]
    %v108 = vld [vmem:[#allocation2 + $0xe0] sm:$0xf]
    %v109 = vld [vmem:[#allocation2 + $0xe4] sm:$0xf]
    %v110 = vld [vmem:[#allocation2 + $0xe8] sm:$0xf]
    %v111 = vld [vmem:[#allocation2 + $0xec] sm:$0xf]
    %v112 = vld [vmem:[#allocation2 + $0xf0] sm:$0xf]
    %v113 = vld [vmem:[#allocation2 + $0xf4] sm:$0xf]
    %v114 = vld [vmem:[#allocation2 + $0xf8] sm:$0xf]
    %v115 = vld [vmem:[#allocation2 + $0xfc] sm:$0xf]
    %v116 = vld [vmem:[%s2] sm:$0x1]
    %v118 = vperm.slane %v116, 0
    %v184 = vunpack.c.l.b16 %v52
    %v185 = vunpack.c.l.b16 %v53
    %v186 = vunpack.c.l.b16 %v54
    %v187 = vunpack.c.l.b16 %v55
    %v188 = vunpack.c.l.b16 %v56
    %v189 = vunpack.c.l.b16 %v57
    %v190 = vunpack.c.l.b16 %v58
    %v191 = vunpack.c.l.b16 %v59
    %v192 = vunpack.c.l.b16 %v60
    %v193 = vunpack.c.l.b16 %v61
    %v194 = vunpack.c.l.b16 %v62
    %v195 = vunpack.c.l.b16 %v63
    %v196 = vunpack.c.l.b16 %v64
    %v197 = vunpack.c.l.b16 %v65
    %v198 = vunpack.c.l.b16 %v66
    %v199 = vunpack.c.l.b16 %v67
    %v200 = vunpack.c.l.b16 %v68
    %v201 = vunpack.c.l.b16 %v69
    %v202 = vunpack.c.l.b16 %v70
    %v203 = vunpack.c.l.b16 %v71
    %v204 = vunpack.c.l.b16 %v72
    %v205 = vunpack.c.l.b16 %v73
    %v206 = vunpack.c.l.b16 %v74
    %v207 = vunpack.c.l.b16 %v75
    %v208 = vunpack.c.l.b16 %v76
    %v209 = vunpack.c.l.b16 %v77
    %v210 = vunpack.c.l.b16 %v78
    %v211 = vunpack.c.l.b16 %v79
    %v212 = vunpack.c.l.b16 %v80
    %v213 = vunpack.c.l.b16 %v81
    %v214 = vunpack.c.l.b16 %v82
    %v215 = vunpack.c.l.b16 %v83
    %v216 = vunpack.c.l.b16 %v84
    %v217 = vunpack.c.l.b16 %v85
    %v218 = vunpack.c.l.b16 %v86
    %v219 = vunpack.c.l.b16 %v87
    %v220 = vunpack.c.l.b16 %v88
    %v221 = vunpack.c.l.b16 %v89
    %v222 = vunpack.c.l.b16 %v90
    %v223 = vunpack.c.l.b16 %v91
    %v224 = vunpack.c.l.b16 %v92
    %v225 = vunpack.c.l.b16 %v93
    %v226 = vunpack.c.l.b16 %v94
    %v227 = vunpack.c.l.b16 %v95
    %v228 = vunpack.c.l.b16 %v96
    %v229 = vunpack.c.l.b16 %v97
    %v230 = vunpack.c.l.b16 %v98
    %v231 = vunpack.c.l.b16 %v99
    %v232 = vunpack.c.l.b16 %v100
    %v233 = vunpack.c.l.b16 %v101
    %v234 = vunpack.c.l.b16 %v102
    %v235 = vunpack.c.l.b16 %v103
    %v236 = vunpack.c.l.b16 %v104
    %v237 = vunpack.c.l.b16 %v105
    %v238 = vunpack.c.l.b16 %v106
    %v239 = vunpack.c.l.b16 %v107
    %v240 = vunpack.c.l.b16 %v108
    %v241 = vunpack.c.l.b16 %v109
    %v242 = vunpack.c.l.b16 %v110
    %v243 = vunpack.c.l.b16 %v111
    %v244 = vunpack.c.l.b16 %v112
    %v245 = vunpack.c.l.b16 %v113
    %v246 = vunpack.c.l.b16 %v114
    %v247 = vunpack.c.l.b16 %v115
    %v248 = vpack.c.b16 %v185, %v184
    %v249 = vpack.c.b16 %v187, %v186
    %v250 = vpack.c.b16 %v189, %v188
    %v251 = vpack.c.b16 %v191, %v190
    %v252 = vpack.c.b16 %v193, %v192
    %v253 = vpack.c.b16 %v195, %v194
    %v254 = vpack.c.b16 %v197, %v196
    %v255 = vpack.c.b16 %v199, %v198
    %v256 = vpack.c.b16 %v201, %v200
    %v257 = vpack.c.b16 %v203, %v202
    %v258 = vpack.c.b16 %v205, %v204
    %v259 = vpack.c.b16 %v207, %v206
    %v260 = vpack.c.b16 %v209, %v208
    %v261 = vpack.c.b16 %v211, %v210
    %v262 = vpack.c.b16 %v213, %v212
    %v263 = vpack.c.b16 %v215, %v214
    %v264 = vpack.c.b16 %v217, %v216
    %v265 = vpack.c.b16 %v219, %v218
    %v266 = vpack.c.b16 %v221, %v220
    %v267 = vpack.c.b16 %v223, %v222
    %v268 = vpack.c.b16 %v225, %v224
    %v269 = vpack.c.b16 %v227, %v226
    %v270 = vpack.c.b16 %v229, %v228
    %v271 = vpack.c.b16 %v231, %v230
    %v272 = vpack.c.b16 %v233, %v232
    %v273 = vpack.c.b16 %v235, %v234
    %v274 = vpack.c.b16 %v237, %v236
    %v275 = vpack.c.b16 %v239, %v238
    %v276 = vpack.c.b16 %v241, %v240
    %v277 = vpack.c.b16 %v243, %v242
    %v278 = vpack.c.b16 %v245, %v244
    %v279 = vpack.c.b16 %v247, %v246
    %312 = vmatpush.bf16.msra.mxu0 %v255
    %313 = vmatpush.bf16.msra.mxu0 %v254
    %314 = vmatpush.bf16.msra.mxu0 %v253
    %315 = vmatpush.bf16.msra.mxu0 %v252
    %316 = vmatpush.bf16.msra.mxu0 %v251
    %317 = vmatpush.bf16.msra.mxu0 %v250
    %318 = vmatpush.bf16.msra.mxu0 %v249
    %319 = vmatpush.bf16.msra.mxu0 %v248
    %320 = vmatmul.bf16.gmra.mxu0 %v48
    %v321 = vpop.f32.mrf.mxu0
    %v322 = vadd.f32 %v118, %v321
    %v323 = vpop.f32.mrf.mxu0
    %324 = vdwg.mxu0
    %325 = vmatpush.bf16.msra.mxu0 %v263
    %326 = vmatpush.bf16.msra.mxu0 %v262
    %327 = vmatpush.bf16.msra.mxu0 %v261
    %328 = vmatpush.bf16.msra.mxu0 %v260
    %329 = vmatpush.bf16.msra.mxu0 %v259
    %330 = vmatpush.bf16.msra.mxu0 %v258
    %331 = vmatpush.bf16.msra.mxu0 %v257
    %332 = vmatpush.bf16.msra.mxu0 %v256
    %333 = vmatmul.bf16.gmra.mxu0 %v49
    %v334 = vpop.f32.mrf.mxu0
    %v335 = vadd.f32 %v322, %v334
    %v336 = vpop.f32.mrf.mxu0
    %337 = vdwg.mxu0
    %338 = vmatpush.bf16.msra.mxu0 %v271
    %339 = vmatpush.bf16.msra.mxu0 %v270
    %340 = vmatpush.bf16.msra.mxu0 %v269
    %341 = vmatpush.bf16.msra.mxu0 %v268
    %342 = vmatpush.bf16.msra.mxu0 %v267
    %343 = vmatpush.bf16.msra.mxu0 %v266
    %344 = vmatpush.bf16.msra.mxu0 %v265
    %345 = vmatpush.bf16.msra.mxu0 %v264
    %346 = vmatmul.bf16.gmra.mxu0 %v50
    %v347 = vpop.f32.mrf.mxu0
    %v348 = vadd.f32 %v335, %v347
    %v349 = vpop.f32.mrf.mxu0
    %350 = vdwg.mxu0
    %351 = vmatpush.bf16.msra.mxu0 %v279
    %352 = vmatpush.bf16.msra.mxu0 %v278
    %353 = vmatpush.bf16.msra.mxu0 %v277
    %354 = vmatpush.bf16.msra.mxu0 %v276
    %355 = vmatpush.bf16.msra.mxu0 %v275
    %356 = vmatpush.bf16.msra.mxu0 %v274
    %357 = vmatpush.bf16.msra.mxu0 %v273
    %358 = vmatpush.bf16.msra.mxu0 %v272
    %359 = vmatmul.bf16.gmra.mxu0 %v51
    %v360 = vpop.f32.mrf.mxu0
    %v361 = vadd.f32 %v348, %v360
    %v362 = vpop.f32.mrf.mxu0
    %363 = vdwg.mxu0
    %364 = vst [vmem:[#allocation5] sm:$0xf] %v361
    // Predicated region
    $region18: #{embedding_layer.1} parent=1 // pred_check
      _
    $region19: #{embedding_layer.1} parent=1 // pred_check_branch
      %366 = sbr.rel (0) target = $region21
    $region20: #{embedding_layer.1} parent=1 // pred_region
      %368 = vsyncadd [#allocation4], 0
      %s370 = sshll.u32 [#allocation5], 4
      %s371 = int_to_ptr.vmem [resolvable:$true] %s370
      %s372 = sshll.u32 %s3, 4
      %s373 = int_to_ptr.hbm [resolvable:$true] %s372
      %375 = dma.vmem_to_hbm [thread:$0]  %s371, 64, %s373, [#allocation4]
    $region21: #{embedding_layer.1} parent=1 // pred_fallthru
      _
    // Predicated region
    $region22: #{embedding_layer.1} parent=1 // pred_check
      _
    $region23: #{embedding_layer.1} parent=1 // pred_check_branch
      %377 = sbr.rel (0) target = $region25
    $region24: #{embedding_layer.1} parent=1 // pred_region
      %379 = dma.done [#allocation4], 64
    $region25: #{embedding_layer.1} parent=1 // pred_fallthru
      _
    %380 = vsyncpa [#allocation3], 1
    %381 = vsyncpa [#allocation4], 1

</llo_original>
